<compile_context>
chip_gen: v7x
topology: tpu7x:2x2x1
jax: 0.10.0
libtpu: 0.0.40
codegen_flags: <defaults>
</compile_context>

<pallas_src>
import jax
import jax.numpy as jnp
from jax import lax
from jax.experimental import pallas as pl
from jax.experimental.pallas import tpu as pltpu


def _round_up(x, m):
    return ((x + m - 1) // m) * m


def _cf_kernel(u_idx_ref, a_idx_ref, user_tbl_ref, art_tbl_ref,
               w1u_ref, w1a_ref, b1_ref, w2_ref, b2_ref, o_ref):
    tb = o_ref.shape[0]
    nu = user_tbl_ref.shape[0]
    na = art_tbl_ref.shape[0]

    # ---- fused embedding gather: exact one-hot matmul on the MXU ----
    u_ids = u_idx_ref[...]                                    # (TB, 1) int32
    a_ids = a_idx_ref[...]                                    # (TB, 1) int32
    u_oh = (lax.broadcasted_iota(jnp.int32, (tb, nu), 1) == u_ids).astype(jnp.float32)
    a_oh = (lax.broadcasted_iota(jnp.int32, (tb, na), 1) == a_ids).astype(jnp.float32)
    u_emb = jnp.dot(u_oh, user_tbl_ref[...], preferred_element_type=jnp.float32)
    a_emb = jnp.dot(a_oh, art_tbl_ref[...], preferred_element_type=jnp.float32)

    # ---- fc1 + ReLU (concat-free: concat(u, a) @ W1 == u @ W1u + a @ W1a) ----
    h = (jnp.dot(u_emb, w1u_ref[...], preferred_element_type=jnp.float32)
         + jnp.dot(a_emb, w1a_ref[...], preferred_element_type=jnp.float32)
         + b1_ref[...])
    h = jnp.maximum(h, 0.0)

    # ---- fc2 (N=1) as VPU multiply + lane reduction, then sigmoid ----
    y = jnp.sum(h * w2_ref[...], axis=-1, keepdims=True) + b2_ref[...]
    o_ref[...] = jax.nn.sigmoid(y).astype(o_ref.dtype)


def cf_forward(params, user, artwork, *, block_rows=256):
    """Forward pass of CollaborativeFiltering.

    user, artwork: int index vectors of shape (B,).
    Returns (B, 1) float32 scores in (0, 1).
    """
    user_tbl, art_tbl, w1u, w1a, b1, w2, b2 = params
    B = int(user.shape[0])

    # Batch tile: multiple of 8 sublanes; pad B up to a multiple of the tile.
    tb = min(block_rows, _round_up(max(B, 1), 8))
    padded_b = _round_up(B, tb)
    pad = padded_b - B
    u_idx = jnp.pad(user.astype(jnp.int32), (0, pad)).reshape(padded_b, 1)
    a_idx = jnp.pad(artwork.astype(jnp.int32), (0, pad)).reshape(padded_b, 1)

    nu, d = user_tbl.shape
    na = art_tbl.shape[0]
    h = w1u.shape[1]
    flops = padded_b * 2 * (nu * d + na * d + 2 * d * h + h)
    bytes_accessed = 4 * ((nu + na) * d + 2 * d * h + 2 * h + 1 + 3 * padded_b)

    out = pl.pallas_call(
        _cf_kernel,
        out_shape=jax.ShapeDtypeStruct((padded_b, 1), jnp.float32),
        grid=(padded_b // tb,),
        in_specs=[
            pl.BlockSpec((tb, 1), lambda i: (i, 0)),          # user indices (tiled)
            pl.BlockSpec((tb, 1), lambda i: (i, 0)),          # artwork indices (tiled)
            pl.BlockSpec(user_tbl.shape, lambda i: (0, 0)),   # resident tables/weights
            pl.BlockSpec(art_tbl.shape, lambda i: (0, 0)),
            pl.BlockSpec(w1u.shape, lambda i: (0, 0)),
            pl.BlockSpec(w1a.shape, lambda i: (0, 0)),
            pl.BlockSpec(b1.shape, lambda i: (0, 0)),
            pl.BlockSpec(w2.shape, lambda i: (0, 0)),
            pl.BlockSpec(b2.shape, lambda i: (0, 0)),
        ],
        out_specs=pl.BlockSpec((tb, 1), lambda i: (i, 0)),
        compiler_params=pltpu.CompilerParams(
            dimension_semantics=("parallel",)),
        cost_estimate=pl.CostEstimate(
            flops=flops, transcendentals=padded_b,
            bytes_accessed=bytes_accessed),
    )(u_idx, a_idx, user_tbl, art_tbl, w1u, w1a, b1, w2, b2)
    return out[:B]


def init_params(key, num_users, num_artworks, embedding_dim=50, hidden=128):
    """Deterministic synthetic parameters matching the PyTorch module shapes."""
    k_ue, k_ae, k_w1, k_b1, k_w2, k_b2 = jax.random.split(key, 6)

    # nn.Embedding: N(0, 1)
    user_tbl = jax.random.normal(k_ue, (num_users, embedding_dim), jnp.float32)
    art_tbl = jax.random.normal(k_ae, (num_artworks, embedding_dim), jnp.float32)

    # nn.Linear(2*D, 128): uniform(-1/sqrt(fan_in), ...); stored transposed and
    # split into the user-half / artwork-half of the input features.
    fan1 = 2 * embedding_dim
    lim1 = 1.0 / jnp.sqrt(fan1)
    w1 = jax.random.uniform(k_w1, (fan1, hidden), jnp.float32, -lim1, lim1)
    b1 = jax.random.uniform(k_b1, (1, hidden), jnp.float32, -lim1, lim1)
    w1u, w1a = w1[:embedding_dim], w1[embedding_dim:]

    # nn.Linear(128, 1); stored as a (1, 128) row for the VPU reduction.
    lim2 = 1.0 / jnp.sqrt(hidden)
    w2 = jax.random.uniform(k_w2, (1, hidden), jnp.float32, -lim2, lim2)
    b2 = jax.random.uniform(k_b2, (1, 1), jnp.float32, -lim2, lim2)

    return (user_tbl, art_tbl, w1u, w1a, b1, w2, b2)


def cf_reference(params, user, artwork):
    """Pure-JAX reference (concat formulation) for correctness checking."""
    user_tbl, art_tbl, w1u, w1a, b1, w2, b2 = params
    x = jnp.concatenate(
        [jnp.take(user_tbl, user, axis=0), jnp.take(art_tbl, artwork, axis=0)],
        axis=1)
    w1 = jnp.concatenate([w1u, w1a], axis=0)
    h = jnp.maximum(x @ w1 + b1, 0.0)
    return jax.nn.sigmoid(h @ w2.T + b2)


if __name__ == "__main__":
    num_users = 64
    num_artworks = 128
    embedding_dim = 50

    key = jax.random.PRNGKey(0)
    k_params = jax.random.fold_in(key, 0)
    params = init_params(k_params, num_users, num_artworks, embedding_dim)

    # Two cases: single-tile (batch=8) and multi-tile with padding (batch=300).
    for batch, block_rows in ((8, 256), (300, 128)):
        k_user, k_art = jax.random.split(jax.random.fold_in(key, batch))
        user = jax.random.randint(k_user, (batch,), 0, num_users, dtype=jnp.int32)
        artwork = jax.random.randint(k_art, (batch,), 0, num_artworks, dtype=jnp.int32)

        out = jax.block_until_ready(
            cf_forward(params, user, artwork, block_rows=block_rows))
        ref = cf_reference(params, user, artwork)

        assert out.shape == (batch, 1), out.shape
        assert jnp.allclose(out, ref, atol=1e-5, rtol=1e-5), "mismatch vs reference"

    print("KERNEL_OK")
</pallas_src>

<mosaic_0001>
module attributes {stable_mosaic.version = 11 : i64} {
  func.func @_cf_kernel(%arg0: i32, %arg1: memref<8x1xi32, #tpu.memory_space<vmem>>, %arg2: memref<8x1xi32, #tpu.memory_space<vmem>>, %arg3: memref<64x50xf32, #tpu.memory_space<vmem>>, %arg4: memref<128x50xf32, #tpu.memory_space<vmem>>, %arg5: memref<50x128xf32, #tpu.memory_space<vmem>>, %arg6: memref<50x128xf32, #tpu.memory_space<vmem>>, %arg7: memref<1x128xf32, #tpu.memory_space<vmem>>, %arg8: memref<1x128xf32, #tpu.memory_space<vmem>>, %arg9: memref<1x1xf32, #tpu.memory_space<vmem>>, %arg10: memref<8x1xf32, #tpu.memory_space<vmem>>) attributes {dimension_semantics = [#tpu.dimension_semantics<parallel>], iteration_bounds = array<i64: 1>, scalar_prefetch = 0 : i64, scratch_operands = 0 : i64, tpu.core_type = #tpu.core_type<tc>, window_params = [{transform_indices = @transform_0, window_bounds = array<i64: 8, 1>}, {transform_indices = @transform_1, window_bounds = array<i64: 8, 1>}, {pipeline_mode = #tpu.pipeline_mode<synchronous>, transform_indices = @transform_2, window_bounds = array<i64: 64, 50>}, {pipeline_mode = #tpu.pipeline_mode<synchronous>, transform_indices = @transform_3, window_bounds = array<i64: 128, 50>}, {pipeline_mode = #tpu.pipeline_mode<synchronous>, transform_indices = @transform_4, window_bounds = array<i64: 50, 128>}, {pipeline_mode = #tpu.pipeline_mode<synchronous>, transform_indices = @transform_5, window_bounds = array<i64: 50, 128>}, {pipeline_mode = #tpu.pipeline_mode<synchronous>, transform_indices = @transform_6, window_bounds = array<i64: 1, 128>}, {pipeline_mode = #tpu.pipeline_mode<synchronous>, transform_indices = @transform_7, window_bounds = array<i64: 1, 128>}, {pipeline_mode = #tpu.pipeline_mode<synchronous>, transform_indices = @transform_8, window_bounds = array<i64: 1, 1>}, {transform_indices = @transform_9, window_bounds = array<i64: 8, 1>}]} {
    %c0 = arith.constant 0 : index
    %c0_0 = arith.constant 0 : index
    %0 = vector.load %arg1[%c0, %c0_0] : memref<8x1xi32, #tpu.memory_space<vmem>>, vector<8x1xi32>
    %c0_1 = arith.constant 0 : index
    %c0_2 = arith.constant 0 : index
    %1 = vector.load %arg2[%c0_1, %c0_2] : memref<8x1xi32, #tpu.memory_space<vmem>>, vector<8x1xi32>
    %2 = tpu.iota {dimensions = array<i32: 1>} : vector<8x64xi32>
    %3 = vector.broadcast %0 : vector<8x1xi32> to vector<8x64xi32>
    %4 = arith.cmpi eq, %2, %3 : vector<8x64xi32>
    %5 = arith.extui %4 : vector<8x64xi1> to vector<8x64xi32>
    %6 = arith.sitofp %5 : vector<8x64xi32> to vector<8x64xf32>
    %7 = tpu.iota {dimensions = array<i32: 1>} : vector<8x128xi32>
    %8 = vector.broadcast %1 : vector<8x1xi32> to vector<8x128xi32>
    %9 = arith.cmpi eq, %7, %8 : vector<8x128xi32>
    %10 = arith.extui %9 : vector<8x128xi1> to vector<8x128xi32>
    %11 = arith.sitofp %10 : vector<8x128xi32> to vector<8x128xf32>
    %c0_3 = arith.constant 0 : index
    %c0_4 = arith.constant 0 : index
    %12 = vector.load %arg3[%c0_3, %c0_4] : memref<64x50xf32, #tpu.memory_space<vmem>>, vector<64x50xf32>
    %cst = arith.constant dense<0.000000e+00> : vector<8x50xf32>
    %13 = tpu.matmul %6, %12, %cst {dimension_numbers = #tpu.dot_dimension_numbers<[1], [0], [0], [1], [0, 0, 1, 1], [], []>} : vector<8x64xf32>, vector<64x50xf32>, vector<8x50xf32> -> vector<8x50xf32>
    %c0_5 = arith.constant 0 : index
    %c0_6 = arith.constant 0 : index
    %14 = vector.load %arg4[%c0_5, %c0_6] : memref<128x50xf32, #tpu.memory_space<vmem>>, vector<128x50xf32>
    %cst_7 = arith.constant dense<0.000000e+00> : vector<8x50xf32>
    %15 = tpu.matmul %11, %14, %cst_7 {dimension_numbers = #tpu.dot_dimension_numbers<[1], [0], [0], [1], [0, 0, 1, 1], [], []>} : vector<8x128xf32>, vector<128x50xf32>, vector<8x50xf32> -> vector<8x50xf32>
    %c0_8 = arith.constant 0 : index
    %c0_9 = arith.constant 0 : index
    %16 = vector.load %arg5[%c0_8, %c0_9] : memref<50x128xf32, #tpu.memory_space<vmem>>, vector<50x128xf32>
    %cst_10 = arith.constant dense<0.000000e+00> : vector<8x128xf32>
    %17 = tpu.matmul %13, %16, %cst_10 {dimension_numbers = #tpu.dot_dimension_numbers<[1], [0], [0], [1], [0, 0, 1, 1], [], []>} : vector<8x50xf32>, vector<50x128xf32>, vector<8x128xf32> -> vector<8x128xf32>
    %c0_11 = arith.constant 0 : index
    %c0_12 = arith.constant 0 : index
    %18 = vector.load %arg6[%c0_11, %c0_12] : memref<50x128xf32, #tpu.memory_space<vmem>>, vector<50x128xf32>
    %cst_13 = arith.constant dense<0.000000e+00> : vector<8x128xf32>
    %19 = tpu.matmul %15, %18, %cst_13 {dimension_numbers = #tpu.dot_dimension_numbers<[1], [0], [0], [1], [0, 0, 1, 1], [], []>} : vector<8x50xf32>, vector<50x128xf32>, vector<8x128xf32> -> vector<8x128xf32>
    %20 = arith.addf %17, %19 : vector<8x128xf32>
    %c0_14 = arith.constant 0 : index
    %c0_15 = arith.constant 0 : index
    %21 = vector.load %arg7[%c0_14, %c0_15] : memref<1x128xf32, #tpu.memory_space<vmem>>, vector<1x128xf32>
    %22 = vector.broadcast %21 : vector<1x128xf32> to vector<8x128xf32>
    %23 = arith.addf %20, %22 : vector<8x128xf32>
    %cst_16 = arith.constant 0.000000e+00 : f32
    %24 = vector.broadcast %cst_16 : f32 to vector<8x128xf32>
    %25 = arith.maximumf %23, %24 : vector<8x128xf32>
    %c0_17 = arith.constant 0 : index
    %c0_18 = arith.constant 0 : index
    %26 = vector.load %arg8[%c0_17, %c0_18] : memref<1x128xf32, #tpu.memory_space<vmem>>, vector<1x128xf32>
    %27 = vector.broadcast %26 : vector<1x128xf32> to vector<8x128xf32>
    %28 = arith.mulf %25, %27 : vector<8x128xf32>
    %cst_19 = arith.constant dense<0.000000e+00> : vector<8xf32>
    %29 = vector.multi_reduction <add>, %28, %cst_19 [1] : vector<8x128xf32> to vector<8xf32>
    %30 = vector.shape_cast %29 : vector<8xf32> to vector<8x1xf32>
    %c0_20 = arith.constant 0 : index
    %c0_21 = arith.constant 0 : index
    %31 = vector.load %arg9[%c0_20, %c0_21] : memref<1x1xf32, #tpu.memory_space<vmem>>, vector<1x1xf32>
    %32 = vector.broadcast %31 : vector<1x1xf32> to vector<8x1xf32>
    %33 = arith.addf %30, %32 : vector<8x1xf32>
    %34 = arith.negf %33 : vector<8x1xf32>
    %35 = math.exp %34 : vector<8x1xf32>
    %cst_22 = arith.constant 1.000000e+00 : f32
    %36 = vector.broadcast %cst_22 : f32 to vector<8x1xf32>
    %37 = arith.addf %36, %35 : vector<8x1xf32>
    %38 = arith.divf %36, %37 : vector<8x1xf32>
    %c0_23 = arith.constant 0 : index
    %c0_24 = arith.constant 0 : index
    %39 = vector.load %arg10[%c0_23, %c0_24] : memref<8x1xf32, #tpu.memory_space<vmem>>, vector<8x1xf32>
    tpu.vector_store %arg10[%c0_23, %c0_24], %38 {strides = array<i32>} : memref<8x1xf32, #tpu.memory_space<vmem>>, vector<8x1xf32>,
    return
  }
  func.func @transform_0(%arg0: i32) -> (i32, i32) {
    %c0_i32 = arith.constant 0 : i32
    %c0_i32_0 = arith.constant 0 : i32
    return %arg0, %c0_i32 : i32, i32
  }
  func.func @transform_1(%arg0: i32) -> (i32, i32) {
    %c0_i32 = arith.constant 0 : i32
    %c0_i32_0 = arith.constant 0 : i32
    return %arg0, %c0_i32 : i32, i32
  }
  func.func @transform_2(%arg0: i32) -> (i32, i32) {
    %c0_i32 = arith.constant 0 : i32
    %c0_i32_0 = arith.constant 0 : i32
    %c0_i32_1 = arith.constant 0 : i32
    return %c0_i32, %c0_i32_0 : i32, i32
  }
  func.func @transform_3(%arg0: i32) -> (i32, i32) {
    %c0_i32 = arith.constant 0 : i32
    %c0_i32_0 = arith.constant 0 : i32
    %c0_i32_1 = arith.constant 0 : i32
    return %c0_i32, %c0_i32_0 : i32, i32
  }
  func.func @transform_4(%arg0: i32) -> (i32, i32) {
    %c0_i32 = arith.constant 0 : i32
    %c0_i32_0 = arith.constant 0 : i32
    %c0_i32_1 = arith.constant 0 : i32
    return %c0_i32, %c0_i32_0 : i32, i32
  }
  func.func @transform_5(%arg0: i32) -> (i32, i32) {
    %c0_i32 = arith.constant 0 : i32
    %c0_i32_0 = arith.constant 0 : i32
    %c0_i32_1 = arith.constant 0 : i32
    return %c0_i32, %c0_i32_0 : i32, i32
  }
  func.func @transform_6(%arg0: i32) -> (i32, i32) {
    %c0_i32 = arith.constant 0 : i32
    %c0_i32_0 = arith.constant 0 : i32
    %c0_i32_1 = arith.constant 0 : i32
    return %c0_i32, %c0_i32_0 : i32, i32
  }
  func.func @transform_7(%arg0: i32) -> (i32, i32) {
    %c0_i32 = arith.constant 0 : i32
    %c0_i32_0 = arith.constant 0 : i32
    %c0_i32_1 = arith.constant 0 : i32
    return %c0_i32, %c0_i32_0 : i32, i32
  }
  func.func @transform_8(%arg0: i32) -> (i32, i32) {
    %c0_i32 = arith.constant 0 : i32
    %c0_i32_0 = arith.constant 0 : i32
    %c0_i32_1 = arith.constant 0 : i32
    return %c0_i32, %c0_i32_0 : i32, i32
  }
  func.func @transform_9(%arg0: i32) -> (i32, i32) {
    %c0_i32 = arith.constant 0 : i32
    %c0_i32_0 = arith.constant 0 : i32
    return %arg0, %c0_i32 : i32, i32
  }
}

</mosaic_0001>

<llo_original>
// kernel: tpu_custom_call.1
$region0: #{tpu_custom_call.1}
  #allocation0 [shape = 'u32[]', space=smem, size = 0x4, offset = 0x4, fixed_abs, tag = 'smem constant byte address 0x4 - core index']
  #allocation1 [shape = 'u32[144,128]{1,0:T(1,128)}', space=vmem, size = 0x12000, scoped, tag = 'internal scratch']
  #allocation2 [shape = 'f32[1,1]{1,0:T(1,128)S(1)}', space=vmem, size = 0x200, scoped, tag = 'scoped memory for tpu_custom_call.1']
  %s0 = inlined_call_operand.vmem [shape: s32[8,1], index: 0, kind: input, shape index: {}]
  %s1 = inlined_call_operand.vmem [shape: s32[8,1], index: 1, kind: input, shape index: {}]
  %s2 = inlined_call_operand.vmem [shape: f32[64,50], index: 2, kind: input, shape index: {}]
  %s3 = inlined_call_operand.vmem [shape: f32[128,50], index: 3, kind: input, shape index: {}]
  %s4 = inlined_call_operand.vmem [shape: f32[50,128], index: 4, kind: input, shape index: {}]
  %s5 = inlined_call_operand.vmem [shape: f32[50,128], index: 5, kind: input, shape index: {}]
  %s6 = inlined_call_operand.vmem [shape: f32[1,128], index: 6, kind: input, shape index: {}]
  %s7 = inlined_call_operand.vmem [shape: f32[1,128], index: 7, kind: input, shape index: {}]
  %s8 = inlined_call_operand.<no memory space> [shape: f32[1,1], index: 8, kind: input, shape index: {}]
  %s9 = inlined_call_operand.vmem [shape: f32[8,1], index: 9, kind: output, shape index: {}]
  %s10 = sld [smem:[#allocation0]]
  $region46: #{tpu_custom_call.1} parent=0
    _
  %s12 = ssub.s32 1, %s10
  %s13 = scalar_select 0, %s12, %s10
  %v14 = vstv %s8
  %15 = vst [vmem:[#allocation2] sm:$0x1] %v14
  // Predicated region
  $region2: #{tpu_custom_call.1} parent=0 // pred_check
    _
  $region3: #{tpu_custom_call.1} parent=0 // pred_check_branch
    %17 = sbr.rel (0) target = $region5
  $region4: #{tpu_custom_call.1} parent=0 // pred_region
    _
  $region5: #{tpu_custom_call.1} parent=0 // pred_fallthru
    _
  // Predicated region
  $region6: #{tpu_custom_call.1} parent=0 // pred_check
    _
  $region7: #{tpu_custom_call.1} parent=0 // pred_check_branch
    %19 = sbr.rel (0) target = $region9
  $region8: #{tpu_custom_call.1} parent=0 // pred_region
    _
  $region9: #{tpu_custom_call.1} parent=0 // pred_fallthru
    _
  // Predicated region
  $region10: #{tpu_custom_call.1} parent=0 // pred_check
    _
  $region11: #{tpu_custom_call.1} parent=0 // pred_check_branch
    %21 = sbr.rel (0) target = $region13
  $region12: #{tpu_custom_call.1} parent=0 // pred_region
    _
  $region13: #{tpu_custom_call.1} parent=0 // pred_fallthru
    _
  // Predicated region
  $region14: #{tpu_custom_call.1} parent=0 // pred_check
    _
  $region15: #{tpu_custom_call.1} parent=0 // pred_check_branch
    %23 = sbr.rel (0) target = $region17
  $region16: #{tpu_custom_call.1} parent=0 // pred_region
    _
  $region17: #{tpu_custom_call.1} parent=0 // pred_fallthru
    _
  // Predicated region
  $region18: #{tpu_custom_call.1} parent=0 // pred_check
    _
  $region19: #{tpu_custom_call.1} parent=0 // pred_check_branch
    %25 = sbr.rel (0) target = $region21
  $region20: #{tpu_custom_call.1} parent=0 // pred_region
    _
  $region21: #{tpu_custom_call.1} parent=0 // pred_fallthru
    _
  // Predicated region
  $region22: #{tpu_custom_call.1} parent=0 // pred_check
    _
  $region23: #{tpu_custom_call.1} parent=0 // pred_check_branch
    %27 = sbr.rel (0) target = $region25
  $region24: #{tpu_custom_call.1} parent=0 // pred_region
    _
  $region25: #{tpu_custom_call.1} parent=0 // pred_fallthru
    _
  // Predicated region
  $region26: #{tpu_custom_call.1} parent=0 // pred_check
    _
  $region27: #{tpu_custom_call.1} parent=0 // pred_check_branch
    %29 = sbr.rel (0) target = $region29
  $region28: #{tpu_custom_call.1} parent=0 // pred_region
    _
  $region29: #{tpu_custom_call.1} parent=0 // pred_fallthru
    _
  // Predicated region
  $region30: #{tpu_custom_call.1} parent=0 // pred_check
    _
  $region31: #{tpu_custom_call.1} parent=0 // pred_check_branch
    %31 = sbr.rel (0) target = $region33
  $region32: #{tpu_custom_call.1} parent=0 // pred_region
    _
  $region33: #{tpu_custom_call.1} parent=0 // pred_fallthru
    _
  // Predicated region
  $region34: #{tpu_custom_call.1} parent=0 // pred_check
    _
  $region35: #{tpu_custom_call.1} parent=0 // pred_check_branch
    %33 = sbr.rel (0) target = $region37
  $region36: #{tpu_custom_call.1} parent=0 // pred_region
    _
  $region37: #{tpu_custom_call.1} parent=0 // pred_fallthru
    _
  %v34 = vld [vmem:[%s0] sm:$0xff]
  %v35 = vld [vmem:[%s1] sm:$0xff]
  %v36 = vlaneseq
  %v37 = vand.u32 %v36, 127
  %38 = vset.pattern.permute.xlu0 0
  %39 = vperm.xlu0 %38, %v34
  %v40 = vpop.permute.xlu0 %39
  %vm41 = vcmp.eq.s32.totalorder %v37, %v40
  %v42 = vsel %vm41, 1, 0
  %v43 = vcvt.s32.f32 %v42
  %44 = vset.pattern.permute.xlu0 0
  %45 = vperm.xlu0 %44, %v35
  %v46 = vpop.permute.xlu0 %45
  %vm47 = vcmp.eq.s32.totalorder %v37, %v46
  %v48 = vsel %vm47, 1, 0
  %v49 = vcvt.s32.f32 %v48
  %v50 = vld [vmem:[%s2] sm:$0xff]
  %v51 = vld [vmem:[%s2 + $0x8] sm:$0xff]
  %v52 = vld [vmem:[%s2 + $0x10] sm:$0xff]
  %v53 = vld [vmem:[%s2 + $0x18] sm:$0xff]
  %v54 = vld [vmem:[%s2 + $0x20] sm:$0xff]
  %v55 = vld [vmem:[%s2 + $0x28] sm:$0xff]
  %v56 = vld [vmem:[%s2 + $0x30] sm:$0xff]
  %v57 = vld [vmem:[%s2 + $0x38] sm:$0xff]
  %vm58 = vcmask 523264
  %v60 = vsel %vm58, %v43, 0
  %62 = vmatprep.subr.mxu0 0.0
  %63 = vmatpush1.msra.mxu0 %v50
  %64 = vmatprep.subr.mxu0 0.0
  %65 = vmatpush1.msra.mxu0 %v51
  %66 = vmatprep.subr.mxu0 0.0
  %67 = vmatpush1.msra.mxu0 %v52
  %68 = vmatprep.subr.mxu0 0.0
  %69 = vmatpush1.msra.mxu0 %v53
  %70 = vmatprep.subr.mxu0 0.0
  %71 = vmatpush1.msra.mxu0 %v54
  %72 = vmatprep.subr.mxu0 0.0
  %73 = vmatpush1.msra.mxu0 %v55
  %74 = vmatprep.subr.mxu0 0.0
  %75 = vmatpush1.msra.mxu0 %v56
  %76 = vmatprep.subr.mxu0 0.0
  %77 = vmatpush1.msra.mxu0 %v57
  %78 = vmatprep.subr.mxu0 0.0
  %79 = vmatpush1.msra.mxu0 0.0
  %80 = vmatprep.subr.mxu0 0.0
  %81 = vmatpush1.msra.mxu0 0.0
  %82 = vmatprep.subr.mxu0 0.0
  %83 = vmatpush1.msra.mxu0 0.0
  %84 = vmatprep.subr.mxu0 0.0
  %85 = vmatpush1.msra.mxu0 0.0
  %86 = vmatprep.subr.mxu0 0.0
  %87 = vmatpush1.msra.mxu0 0.0
  %88 = vmatprep.subr.mxu0 0.0
  %89 = vmatpush1.msra.mxu0 0.0
  %90 = vmatprep.subr.mxu0 0.0
  %91 = vmatpush1.msra.mxu0 0.0
  %92 = vmatprep.subr.mxu0 0.0
  %93 = vmatpush1.msra.mxu0 0.0
  %94 = vmatprep.subr.mxu0 0.0
  %95 = vmatpush1.msra.mxu0 0.0
  %96 = vmatprep.subr.mxu0 0.0
  %97 = vmatpush1.msra.mxu0 0.0
  %98 = vmatprep.subr.mxu0 0.0
  %99 = vmatpush1.msra.mxu0 0.0
  %100 = vmatprep.subr.mxu0 0.0
  %101 = vmatpush1.msra.mxu0 0.0
  %102 = vmatprep.subr.mxu0 0.0
  %103 = vmatpush1.msra.mxu0 0.0
  %104 = vmatprep.subr.mxu0 0.0
  %105 = vmatpush1.msra.mxu0 0.0
  %106 = vmatprep.subr.mxu0 0.0
  %107 = vmatpush1.msra.mxu0 0.0
  %108 = vmatprep.subr.mxu0 0.0
  %109 = vmatpush1.msra.mxu0 0.0
  %110 = vmatprep.subr.mxu0 0.0
  %111 = vmatpush1.msra.mxu0 0.0
  %112 = vmatprep.subr.mxu0 0.0
  %113 = vmatpush1.msra.mxu0 0.0
  %114 = vmatprep.subr.mxu0 0.0
  %115 = vmatpush1.msra.mxu0 0.0
  %116 = vmatprep.subr.mxu0 0.0
  %117 = vmatpush1.msra.mxu0 0.0
  %118 = vmatprep.subr.mxu0 0.0
  %119 = vmatpush1.msra.mxu0 0.0
  %120 = vmatprep.subr.mxu0 0.0
  %121 = vmatpush1.msra.mxu0 0.0
  %122 = vmatprep.subr.mxu0 0.0
  %123 = vmatpush1.msra.mxu0 0.0
  %124 = vmatprep.subr.mxu0 0.0
  %125 = vmatpush1.msra.mxu0 0.0
  %126 = vmatprep.mubr.f32.mxu0 0.0
  %127 = vmatmul.mubr.f32.gmra.mrb[0].mxu0 %v60
  %v128 = vpop.f32.mrb[0].mxu0
  %v129 = vadd.f32 0.0, %v128
  %v130 = vpop.f32.mrb[0].mxu0
  %131 = vdwg.mxu0
  %v132 = vld [vmem:[%s3] sm:$0xff]
  %v133 = vld [vmem:[%s3 + $0x8] sm:$0xff]
  %v134 = vld [vmem:[%s3 + $0x10] sm:$0xff]
  %v135 = vld [vmem:[%s3 + $0x18] sm:$0xff]
  %v136 = vld [vmem:[%s3 + $0x20] sm:$0xff]
  %v137 = vld [vmem:[%s3 + $0x28] sm:$0xff]
  %v138 = vld [vmem:[%s3 + $0x30] sm:$0xff]
  %v139 = vld [vmem:[%s3 + $0x38] sm:$0xff]
  %v140 = vld [vmem:[%s3 + $0x40] sm:$0xff]
  %v141 = vld [vmem:[%s3 + $0x48] sm:$0xff]
  %v142 = vld [vmem:[%s3 + $0x50] sm:$0xff]
  %v143 = vld [vmem:[%s3 + $0x58] sm:$0xff]
  %v144 = vld [vmem:[%s3 + $0x60] sm:$0xff]
  %v145 = vld [vmem:[%s3 + $0x68] sm:$0xff]
  %v146 = vld [vmem:[%s3 + $0x70] sm:$0xff]
  %v147 = vld [vmem:[%s3 + $0x78] sm:$0xff]
  %148 = vmatprep.subr.mxu0 0.0
  %149 = vmatpush1.msra.mxu0 %v132
  %150 = vmatprep.subr.mxu0 0.0
  %151 = vmatpush1.msra.mxu0 %v133
  %152 = vmatprep.subr.mxu0 0.0
  %153 = vmatpush1.msra.mxu0 %v134
  %154 = vmatprep.subr.mxu0 0.0
  %155 = vmatpush1.msra.mxu0 %v135
  %156 = vmatprep.subr.mxu0 0.0
  %157 = vmatpush1.msra.mxu0 %v136
  %158 = vmatprep.subr.mxu0 0.0
  %159 = vmatpush1.msra.mxu0 %v137
  %160 = vmatprep.subr.mxu0 0.0
  %161 = vmatpush1.msra.mxu0 %v138
  %162 = vmatprep.subr.mxu0 0.0
  %163 = vmatpush1.msra.mxu0 %v139
  %164 = vmatprep.subr.mxu0 0.0
  %165 = vmatpush1.msra.mxu0 %v140
  %166 = vmatprep.subr.mxu0 0.0
  %167 = vmatpush1.msra.mxu0 %v141
  %168 = vmatprep.subr.mxu0 0.0
  %169 = vmatpush1.msra.mxu0 %v142
  %170 = vmatprep.subr.mxu0 0.0
  %171 = vmatpush1.msra.mxu0 %v143
  %172 = vmatprep.subr.mxu0 0.0
  %173 = vmatpush1.msra.mxu0 %v144
  %174 = vmatprep.subr.mxu0 0.0
  %175 = vmatpush1.msra.mxu0 %v145
  %176 = vmatprep.subr.mxu0 0.0
  %177 = vmatpush1.msra.mxu0 %v146
  %178 = vmatprep.subr.mxu0 0.0
  %179 = vmatpush1.msra.mxu0 %v147
  %180 = vmatprep.subr.mxu0 0.0
  %181 = vmatpush1.msra.mxu0 0.0
  %182 = vmatprep.subr.mxu0 0.0
  %183 = vmatpush1.msra.mxu0 0.0
  %184 = vmatprep.subr.mxu0 0.0
  %185 = vmatpush1.msra.mxu0 0.0
  %186 = vmatprep.subr.mxu0 0.0
  %187 = vmatpush1.msra.mxu0 0.0
  %188 = vmatprep.subr.mxu0 0.0
  %189 = vmatpush1.msra.mxu0 0.0
  %190 = vmatprep.subr.mxu0 0.0
  %191 = vmatpush1.msra.mxu0 0.0
  %192 = vmatprep.subr.mxu0 0.0
  %193 = vmatpush1.msra.mxu0 0.0
  %194 = vmatprep.subr.mxu0 0.0
  %195 = vmatpush1.msra.mxu0 0.0
  %196 = vmatprep.subr.mxu0 0.0
  %197 = vmatpush1.msra.mxu0 0.0
  %198 = vmatprep.subr.mxu0 0.0
  %199 = vmatpush1.msra.mxu0 0.0
  %200 = vmatprep.subr.mxu0 0.0
  %201 = vmatpush1.msra.mxu0 0.0
  %202 = vmatprep.subr.mxu0 0.0
  %203 = vmatpush1.msra.mxu0 0.0
  %204 = vmatprep.subr.mxu0 0.0
  %205 = vmatpush1.msra.mxu0 0.0
  %206 = vmatprep.subr.mxu0 0.0
  %207 = vmatpush1.msra.mxu0 0.0
  %208 = vmatprep.subr.mxu0 0.0
  %209 = vmatpush1.msra.mxu0 0.0
  %210 = vmatprep.subr.mxu0 0.0
  %211 = vmatpush1.msra.mxu0 0.0
  %212 = vmatprep.mubr.f32.mxu0 0.0
  %213 = vmatmul.mubr.f32.gmra.mrb[0].mxu0 %v49
  %v214 = vpop.f32.mrb[0].mxu0
  %v215 = vadd.f32 0.0, %v214
  %v216 = vpop.f32.mrb[0].mxu0
  %217 = vdwg.mxu0
  %v218 = vld [vmem:[%s4] sm:$0xff]
  %v219 = vld [vmem:[%s4 + $0x8] sm:$0xff]
  %v220 = vld [vmem:[%s4 + $0x10] sm:$0xff]
  %v221 = vld [vmem:[%s4 + $0x18] sm:$0xff]
  %v222 = vld [vmem:[%s4 + $0x20] sm:$0xff]
  %v223 = vld [vmem:[%s4 + $0x28] sm:$0xff]
  %v224 = vld [vmem:[%s4 + $0x30] sm:$0x3]
  %v225 = vld [vmem:[%s5] sm:$0xff]
  %v226 = vld [vmem:[%s5 + $0x8] sm:$0xff]
  %v227 = vld [vmem:[%s5 + $0x10] sm:$0xff]
  %v228 = vld [vmem:[%s5 + $0x18] sm:$0xff]
  %v229 = vld [vmem:[%s5 + $0x20] sm:$0xff]
  %v230 = vld [vmem:[%s5 + $0x28] sm:$0xff]
  %v231 = vld [vmem:[%s5 + $0x30] sm:$0x3]
  %vm232 = vcmask 408576
  %v234 = vsel %vm232, %v215, 0
  %vm236 = vcmask 1041408
  %v238 = vsel %vm236, %v231, 0
  %240 = vmatprep.subr.mxu0 0.0
  %241 = vmatpush1.msra.mxu0 %v225
  %242 = vmatprep.subr.mxu0 0.0
  %243 = vmatpush1.msra.mxu0 %v226
  %244 = vmatprep.subr.mxu0 0.0
  %245 = vmatpush1.msra.mxu0 %v227
  %246 = vmatprep.subr.mxu0 0.0
  %247 = vmatpush1.msra.mxu0 %v228
  %248 = vmatprep.subr.mxu0 0.0
  %249 = vmatpush1.msra.mxu0 %v229
  %250 = vmatprep.subr.mxu0 0.0
  %251 = vmatpush1.msra.mxu0 %v230
  %252 = vmatprep.subr.mxu0 0.0
  %253 = vmatpush1.msra.mxu0 %v238
  %254 = vmatprep.subr.mxu0 0.0
  %255 = vmatpush1.msra.mxu0 0.0
  %256 = vmatprep.subr.mxu0 0.0
  %257 = vmatpush1.msra.mxu0 0.0
  %258 = vmatprep.subr.mxu0 0.0
  %259 = vmatpush1.msra.mxu0 0.0
  %260 = vmatprep.subr.mxu0 0.0
  %261 = vmatpush1.msra.mxu0 0.0
  %262 = vmatprep.subr.mxu0 0.0
  %263 = vmatpush1.msra.mxu0 0.0
  %264 = vmatprep.subr.mxu0 0.0
  %265 = vmatpush1.msra.mxu0 0.0
  %266 = vmatprep.subr.mxu0 0.0
  %267 = vmatpush1.msra.mxu0 0.0
  %268 = vmatprep.subr.mxu0 0.0
  %269 = vmatpush1.msra.mxu0 0.0
  %270 = vmatprep.subr.mxu0 0.0
  %271 = vmatpush1.msra.mxu0 0.0
  %272 = vmatprep.subr.mxu0 0.0
  %273 = vmatpush1.msra.mxu0 0.0
  %274 = vmatprep.subr.mxu0 0.0
  %275 = vmatpush1.msra.mxu0 0.0
  %276 = vmatprep.subr.mxu0 0.0
  %277 = vmatpush1.msra.mxu0 0.0
  %278 = vmatprep.subr.mxu0 0.0
  %279 = vmatpush1.msra.mxu0 0.0
  %280 = vmatprep.subr.mxu0 0.0
  %281 = vmatpush1.msra.mxu0 0.0
  %282 = vmatprep.subr.mxu0 0.0
  %283 = vmatpush1.msra.mxu0 0.0
  %284 = vmatprep.subr.mxu0 0.0
  %285 = vmatpush1.msra.mxu0 0.0
  %286 = vmatprep.subr.mxu0 0.0
  %287 = vmatpush1.msra.mxu0 0.0
  %288 = vmatprep.subr.mxu0 0.0
  %289 = vmatpush1.msra.mxu0 0.0
  %290 = vmatprep.subr.mxu0 0.0
  %291 = vmatpush1.msra.mxu0 0.0
  %292 = vmatprep.subr.mxu0 0.0
  %293 = vmatpush1.msra.mxu0 0.0
  %294 = vmatprep.subr.mxu0 0.0
  %295 = vmatpush1.msra.mxu0 0.0
  %296 = vmatprep.subr.mxu0 0.0
  %297 = vmatpush1.msra.mxu0 0.0
  %298 = vmatprep.subr.mxu0 0.0
  %299 = vmatpush1.msra.mxu0 0.0
  %300 = vmatprep.subr.mxu0 0.0
  %301 = vmatpush1.msra.mxu0 0.0
  %302 = vmatprep.subr.mxu0 0.0
  %303 = vmatpush1.msra.mxu0 0.0
  %304 = vmatprep.mubr.f32.mxu0 0.0
  %305 = vmatmul.mubr.f32.gmra.mrb[0].mxu0 %v234
  %v306 = vpop.f32.mrb[0].mxu0
  %v307 = vadd.f32 0.0, %v306
  %v308 = vpop.f32.mrb[0].mxu0
  %309 = vdwg.mxu0
  %v311 = vsel %vm232, %v129, 0
  %v314 = vsel %vm236, %v224, 0
  %316 = vmatprep.subr.mxu0 0.0
  %317 = vmatpush1.msra.mxu0 %v218
  %318 = vmatprep.subr.mxu0 0.0
  %319 = vmatpush1.msra.mxu0 %v219
  %320 = vmatprep.subr.mxu0 0.0
  %321 = vmatpush1.msra.mxu0 %v220
  %322 = vmatprep.subr.mxu0 0.0
  %323 = vmatpush1.msra.mxu0 %v221
  %324 = vmatprep.subr.mxu0 0.0
  %325 = vmatpush1.msra.mxu0 %v222
  %326 = vmatprep.subr.mxu0 0.0
  %327 = vmatpush1.msra.mxu0 %v223
  %328 = vmatprep.subr.mxu0 0.0
  %329 = vmatpush1.msra.mxu0 %v314
  %330 = vmatprep.subr.mxu0 0.0
  %331 = vmatpush1.msra.mxu0 0.0
  %332 = vmatprep.subr.mxu0 0.0
  %333 = vmatpush1.msra.mxu0 0.0
  %334 = vmatprep.subr.mxu0 0.0
  %335 = vmatpush1.msra.mxu0 0.0
  %336 = vmatprep.subr.mxu0 0.0
  %337 = vmatpush1.msra.mxu0 0.0
  %338 = vmatprep.subr.mxu0 0.0
  %339 = vmatpush1.msra.mxu0 0.0
  %340 = vmatprep.subr.mxu0 0.0
  %341 = vmatpush1.msra.mxu0 0.0
  %342 = vmatprep.subr.mxu0 0.0
  %343 = vmatpush1.msra.mxu0 0.0
  %344 = vmatprep.subr.mxu0 0.0
  %345 = vmatpush1.msra.mxu0 0.0
  %346 = vmatprep.subr.mxu0 0.0
  %347 = vmatpush1.msra.mxu0 0.0
  %348 = vmatprep.subr.mxu0 0.0
  %349 = vmatpush1.msra.mxu0 0.0
  %350 = vmatprep.subr.mxu0 0.0
  %351 = vmatpush1.msra.mxu0 0.0
  %352 = vmatprep.subr.mxu0 0.0
  %353 = vmatpush1.msra.mxu0 0.0
  %354 = vmatprep.subr.mxu0 0.0
  %355 = vmatpush1.msra.mxu0 0.0
  %356 = vmatprep.subr.mxu0 0.0
  %357 = vmatpush1.msra.mxu0 0.0
  %358 = vmatprep.subr.mxu0 0.0
  %359 = vmatpush1.msra.mxu0 0.0
  %360 = vmatprep.subr.mxu0 0.0
  %361 = vmatpush1.msra.mxu0 0.0
  %362 = vmatprep.subr.mxu0 0.0
  %363 = vmatpush1.msra.mxu0 0.0
  %364 = vmatprep.subr.mxu0 0.0
  %365 = vmatpush1.msra.mxu0 0.0
  %366 = vmatprep.subr.mxu0 0.0
  %367 = vmatpush1.msra.mxu0 0.0
  %368 = vmatprep.subr.mxu0 0.0
  %369 = vmatpush1.msra.mxu0 0.0
  %370 = vmatprep.subr.mxu0 0.0
  %371 = vmatpush1.msra.mxu0 0.0
  %372 = vmatprep.subr.mxu0 0.0
  %373 = vmatpush1.msra.mxu0 0.0
  %374 = vmatprep.subr.mxu0 0.0
  %375 = vmatpush1.msra.mxu0 0.0
  %376 = vmatprep.subr.mxu0 0.0
  %377 = vmatpush1.msra.mxu0 0.0
  %378 = vmatprep.subr.mxu0 0.0
  %379 = vmatpush1.msra.mxu0 0.0
  %380 = vmatprep.mubr.f32.mxu0 0.0
  %381 = vmatmul.mubr.f32.gmra.mrb[0].mxu0 %v311
  %v382 = vpop.f32.mrb[0].mxu0
  %v383 = vadd.f32 %v307, %v382
  %v384 = vpop.f32.mrb[0].mxu0
  %385 = vdwg.mxu0
  %v386 = vld [vmem:[%s6] sm:$0x1]
  %v388 = vlaneseq
  %v389 = vshrl.u32 %v388, 7
  %v390 = vsub.s32 0, %v389
  %v391 = vrot.slane %v386, %v390
  %v393 = vadd.f32 %v383, %v391
  %v394 = vmax.f32 %v393, 0.0
  %v395 = vld [vmem:[%s7] sm:$0x1]
  %v397 = vlaneseq
  %v398 = vshrl.u32 %v397, 7
  %v399 = vsub.s32 0, %v398
  %v400 = vrot.slane %v395, %v399
  %v402 = vmul.f32 %v394, %v400
  %403 = vadd.xlane.f32.xlu0 %v402
  %v404 = vpop.xlane.xlu0 %403
  %v405 = vld [vmem:[#allocation2] sm:$0x1]
  %v407 = vlaneseq
  %v408 = vshrl.u32 %v407, 7
  %v409 = vsub.s32 0, %v408
  %v410 = vrot.slane %v405, %v409
  %v412 = vadd.f32 %v404, %v410
  %v413 = vxor.u32 %v412, 2147483648
  %v414 = vmul.f32 %v413, 1.442695
  %v415 = vpow.pop %v414
  %v416 = vadd.f32 %v415, 1.0
  %v417 = vrcp.pop %v416
  %v418 = vmul.f32 1.0, %v417
  %vm419 = vcmask 7168
  %420 = vst.msk [vmem:[%s9] sm:$0xff] %vm419, %v418
  // Predicated region
  $region38: #{tpu_custom_call.1} parent=0 // pred_check
    _
  $region39: #{tpu_custom_call.1} parent=0 // pred_check_branch
    %422 = sbr.rel (0) target = $region41
  $region40: #{tpu_custom_call.1} parent=0 // pred_region
    _
  $region41: #{tpu_custom_call.1} parent=0 // pred_fallthru
    _
  // Predicated region
  $region42: #{tpu_custom_call.1} parent=0 // pred_check
    _
  $region43: #{tpu_custom_call.1} parent=0 // pred_check_branch
    %424 = sbr.rel (0) target = $region45
  $region44: #{tpu_custom_call.1} parent=0 // pred_region
    _
  $region45: #{tpu_custom_call.1} parent=0 // pred_fallthru
    _

</llo_original>
